<compile_context>
chip_gen: v5e
topology: v5e:2x2
jax: 0.10.0
libtpu: 0.0.40
codegen_flags: <defaults>
</compile_context>

<pallas_src>
import jax
import jax.numpy as jnp
from jax.experimental import pallas as pl
from jax.experimental.pallas import tpu as pltpu


def _round_up(x, m):
    return ((x + m - 1) // m) * m


def matcf_kernel(u_ref, v_ref, o_ref):
    # u_ref / v_ref: (K, tb) with the batch on the lane (last) axis.
    k_tot, tb = u_ref.shape
    chunk = 8 if (k_tot > 8 and k_tot % 8 == 0) else k_tot
    acc = jnp.zeros((chunk, tb), jnp.float32)
    # Static (trace-time unrolled) loop over sublane chunks of K: loads stay
    # per-chunk and no full (K, tb) product temporary is materialized.
    for c in range(k_tot // chunk):
        u = u_ref[c * chunk:(c + 1) * chunk, :].astype(jnp.float32)
        v = v_ref[c * chunk:(c + 1) * chunk, :].astype(jnp.float32)
        acc = acc + u * v
    dot = jnp.sum(acc, axis=0, keepdims=True)           # (1, tb), lane-dense
    pre = jnp.maximum(4.0 - dot, 0.0)                   # relu(4 - pre)
    o_ref[...] = jnp.maximum(4.0 - pre, 0.0) + 1.0      # relu(4 - pre) + 1


def _matcf_xla(user_emb, item_emb, user_idx, item_idx):
    """Plain XLA fallback for tiny batches (pallas launch would dominate)."""
    dots = jnp.einsum("bk,kb->b", user_emb[user_idx, :], item_emb[:, item_idx],
                      preferred_element_type=jnp.float32)
    pre = jnp.maximum(4.0 - dots, 0.0)
    return jnp.maximum(4.0 - pre, 0.0) + 1.0


def _pick_tile(B, K, itemsize, n_buf, tb_request):
    """Generation-aware batch-tile and scoped-VMEM-limit selection."""
    try:
        vmem_cap = int(pltpu.get_tpu_info().vmem_capacity_bytes)
    except Exception:
        vmem_cap = 64 * 1024 * 1024            # conservative (v7x-sized) fallback
    if vmem_cap <= 64 * 1024 * 1024:           # v7x-class: 64 MiB physical
        vmem_budget = 40 * 1024 * 1024
    else:                                      # v5e/v6e-class: 128 MiB physical
        vmem_budget = 80 * 1024 * 1024

    # VMEM bytes held live per output lane:
    #   n_buf pipelined copies of both (K,) storage-dtype input columns
    #   + f32 chunk temporaries (u, v: 8 rows each) + the (8,) f32 accumulator
    #   + double-buffered (1,) f32 output.
    per_lane = n_buf * 2 * K * itemsize + (8 + 8 + 8) * 4 + 2 * 4
    tb_cap = max(128, (vmem_budget // per_lane) // 128 * 128)

    tb = 32768 if tb_request is None else tb_request
    tb = min(tb, tb_cap, _round_up(B, 128))
    if B >= 256:
        # keep at least 2 "parallel" grid steps so both v7x TCs get work
        tb = min(tb, _round_up(pl.cdiv(B, 2), 128))
    tb = max(128, (tb // 128) * 128)

    needed = tb * per_lane
    vmem_limit = int(min(vmem_cap - (4 << 20),
                         max(needed + (8 << 20), 32 << 20)))
    return tb, vmem_limit


def matcf_forward(user_emb, item_emb, user_idx, item_idx, *,
                  tb=None, storage_dtype=jnp.bfloat16, input_buffers=2,
                  use_pallas=None, min_pallas_batch=1024):
    """MatCF forward.

    user_emb: (m, k) f32, item_emb: (k, n) f32, user_idx/item_idx: (B,) int32.
    Returns (B,) f32.  `use_pallas=None` auto-gates on batch size.
    """
    B = int(user_idx.shape[0])
    K = int(user_emb.shape[1])

    if use_pallas is None:
        use_pallas = B >= min_pallas_batch
    if not use_pallas:
        return _matcf_xla(user_emb, item_emb, user_idx, item_idx)

    # --- glue: embedding gathers, batch on the lane axis.  The user table is
    # transposed once (tiny (m,k)) so both sides are column gathers producing
    # (K, B) directly; allow_input_fusion lets XLA fuse the gather + cast into
    # the pallas_call operands so U/V need not be materialized in HBM.
    U = user_emb.T[:, user_idx].astype(storage_dtype)   # (K, B)
    V = item_emb[:, item_idx].astype(storage_dtype)     # (K, B)

    itemsize = jnp.dtype(storage_dtype).itemsize
    tb_eff, vmem_limit = _pick_tile(B, K, itemsize, input_buffers, tb)

    grid = (pl.cdiv(B, tb_eff),)          # ragged tail handled by Pallas masking
    B_out = _round_up(B, 128)

    def _in_spec():
        if input_buffers > 2:
            return pl.BlockSpec((K, tb_eff), lambda i: (0, i),
                                pipeline_mode=pl.Buffered(input_buffers))
        return pl.BlockSpec((K, tb_eff), lambda i: (0, i))

    out = pl.pallas_call(
        matcf_kernel,
        out_shape=jax.ShapeDtypeStruct((1, B_out), jnp.float32),
        grid_spec=pltpu.PrefetchScalarGridSpec(
            num_scalar_prefetch=0,
            grid=grid,
            in_specs=[_in_spec(), _in_spec()],
            out_specs=pl.BlockSpec((1, tb_eff), lambda i: (0, i)),
        ),
        compiler_params=pltpu.CompilerParams(
            dimension_semantics=("parallel",),
            allow_input_fusion=[True, True],
            vmem_limit_bytes=vmem_limit,
        ),
    )(U, V)
    return out[0, :B]


if __name__ == "__main__":
    key = jax.random.PRNGKey(0)
    k1, k2, k3, k4, k5, k6 = jax.random.split(key, 6)

    # small shapes consistent with MatCF(m, n, k): m users, n items, k factors
    m, n, k = 16, 24, 32

    user_emb = jax.random.normal(k1, (m, k), dtype=jnp.float32)
    item_emb = jax.random.normal(k2, (k, n), dtype=jnp.float32)

    def reference(uidx, iidx):
        dots = jnp.einsum("bk,kb->b", user_emb[uidx], item_emb[:, iidx])
        return jnp.maximum(4.0 - jnp.maximum(4.0 - dots, 0.0), 0.0) + 1.0

    # --- 1) tiny batch, forced through the Pallas path, exact f32 storage
    B1 = 8
    u1 = jax.random.randint(k3, (B1,), 0, m, dtype=jnp.int32)
    i1 = jax.random.randint(k4, (B1,), 0, n, dtype=jnp.int32)
    out1 = jax.block_until_ready(
        matcf_forward(user_emb, item_emb, u1, i1,
                      storage_dtype=jnp.float32, use_pallas=True))
    ref1 = reference(u1, i1)
    assert out1.shape == (B1,)
    assert jnp.allclose(out1, ref1, atol=1e-5), (out1, ref1)

    # --- 2) ragged, multi-tile batch, default bf16 streaming storage
    B2 = 300
    u2 = jax.random.randint(k5, (B2,), 0, m, dtype=jnp.int32)
    i2 = jax.random.randint(k6, (B2,), 0, n, dtype=jnp.int32)
    out2 = jax.block_until_ready(
        matcf_forward(user_emb, item_emb, u2, i2, use_pallas=True))
    Ub = user_emb[u2].astype(jnp.bfloat16).astype(jnp.float32)
    Vb = item_emb[:, i2].astype(jnp.bfloat16).astype(jnp.float32)
    dots_b = jnp.einsum("bk,kb->b", Ub, Vb)
    ref2 = jnp.maximum(4.0 - jnp.maximum(4.0 - dots_b, 0.0), 0.0) + 1.0
    assert out2.shape == (B2,)
    assert jnp.allclose(out2, ref2, atol=1e-3, rtol=1e-3), (out2, ref2)

    # --- 3) auto-gate: small batch routed through the XLA fallback
    out3 = jax.block_until_ready(matcf_forward(user_emb, item_emb, u1, i1))
    assert jnp.allclose(out3, ref1, atol=1e-5), (out3, ref1)

    print("KERNEL_OK")
</pallas_src>

<mosaic_0001>
module attributes {stable_mosaic.version = 11 : i64} {
  func.func @matcf_kernel(%arg0: i32, %arg1: memref<32x128xf32, #tpu.memory_space<vmem>>, %arg2: memref<32x128xf32, #tpu.memory_space<vmem>>, %arg3: memref<1x128xf32, #tpu.memory_space<vmem>>) attributes {dimension_semantics = [#tpu.dimension_semantics<parallel>], iteration_bounds = array<i64: 1>, scalar_prefetch = 0 : i64, scratch_operands = 0 : i64, tpu.core_type = #tpu.core_type<tc>, window_params = [{transform_indices = @transform_0, window_bounds = array<i64: 32, 128>}, {transform_indices = @transform_1, window_bounds = array<i64: 32, 128>}, {transform_indices = @transform_2, window_bounds = array<i64: 1, 128>}]} {
    %cst = arith.constant 0.000000e+00 : f32
    %0 = vector.broadcast %cst : f32 to vector<8x128xf32>
    %c0 = arith.constant 0 : index
    %c0_0 = arith.constant 0 : index
    %1 = vector.load %arg1[%c0, %c0_0] : memref<32x128xf32, #tpu.memory_space<vmem>>, vector<8x128xf32>
    %c0_1 = arith.constant 0 : index
    %c0_2 = arith.constant 0 : index
    %2 = vector.load %arg2[%c0_1, %c0_2] : memref<32x128xf32, #tpu.memory_space<vmem>>, vector<8x128xf32>
    %3 = arith.mulf %1, %2 : vector<8x128xf32>
    %4 = arith.addf %0, %3 : vector<8x128xf32>
    %c8 = arith.constant 8 : index
    %c0_3 = arith.constant 0 : index
    %5 = vector.load %arg1[%c8, %c0_3] : memref<32x128xf32, #tpu.memory_space<vmem>>, vector<8x128xf32>
    %c8_4 = arith.constant 8 : index
    %c0_5 = arith.constant 0 : index
    %6 = vector.load %arg2[%c8_4, %c0_5] : memref<32x128xf32, #tpu.memory_space<vmem>>, vector<8x128xf32>
    %7 = arith.mulf %5, %6 : vector<8x128xf32>
    %8 = arith.addf %4, %7 : vector<8x128xf32>
    %c16 = arith.constant 16 : index
    %c0_6 = arith.constant 0 : index
    %9 = vector.load %arg1[%c16, %c0_6] : memref<32x128xf32, #tpu.memory_space<vmem>>, vector<8x128xf32>
    %c16_7 = arith.constant 16 : index
    %c0_8 = arith.constant 0 : index
    %10 = vector.load %arg2[%c16_7, %c0_8] : memref<32x128xf32, #tpu.memory_space<vmem>>, vector<8x128xf32>
    %11 = arith.mulf %9, %10 : vector<8x128xf32>
    %12 = arith.addf %8, %11 : vector<8x128xf32>
    %c24 = arith.constant 24 : index
    %c0_9 = arith.constant 0 : index
    %13 = vector.load %arg1[%c24, %c0_9] : memref<32x128xf32, #tpu.memory_space<vmem>>, vector<8x128xf32>
    %c24_10 = arith.constant 24 : index
    %c0_11 = arith.constant 0 : index
    %14 = vector.load %arg2[%c24_10, %c0_11] : memref<32x128xf32, #tpu.memory_space<vmem>>, vector<8x128xf32>
    %15 = arith.mulf %13, %14 : vector<8x128xf32>
    %16 = arith.addf %12, %15 : vector<8x128xf32>
    %cst_12 = arith.constant dense<0.000000e+00> : vector<128xf32>
    %17 = vector.multi_reduction <add>, %16, %cst_12 [0] : vector<8x128xf32> to vector<128xf32>
    %18 = vector.shape_cast %17 : vector<128xf32> to vector<1x128xf32>
    %cst_13 = arith.constant 4.000000e+00 : f32
    %19 = vector.broadcast %cst_13 : f32 to vector<1x128xf32>
    %20 = arith.subf %19, %18 : vector<1x128xf32>
    %cst_14 = arith.constant 0.000000e+00 : f32
    %21 = vector.broadcast %cst_14 : f32 to vector<1x128xf32>
    %22 = arith.maximumf %20, %21 : vector<1x128xf32>
    %cst_15 = arith.constant 4.000000e+00 : f32
    %23 = vector.broadcast %cst_15 : f32 to vector<1x128xf32>
    %24 = arith.subf %23, %22 : vector<1x128xf32>
    %cst_16 = arith.constant 0.000000e+00 : f32
    %25 = vector.broadcast %cst_16 : f32 to vector<1x128xf32>
    %26 = arith.maximumf %24, %25 : vector<1x128xf32>
    %cst_17 = arith.constant 1.000000e+00 : f32
    %27 = vector.broadcast %cst_17 : f32 to vector<1x128xf32>
    %28 = arith.addf %26, %27 : vector<1x128xf32>
    %c0_18 = arith.constant 0 : index
    %c0_19 = arith.constant 0 : index
    %29 = vector.load %arg3[%c0_18, %c0_19] : memref<1x128xf32, #tpu.memory_space<vmem>>, vector<1x128xf32>
    tpu.vector_store %arg3[%c0_18, %c0_19], %28 {strides = array<i32>} : memref<1x128xf32, #tpu.memory_space<vmem>>, vector<1x128xf32>,
    return
  }
  func.func @transform_0(%arg0: i32) -> (i32, i32) {
    %c0_i32 = arith.constant 0 : i32
    %c0_i32_0 = arith.constant 0 : i32
    return %c0_i32, %arg0 : i32, i32
  }
  func.func @transform_1(%arg0: i32) -> (i32, i32) {
    %c0_i32 = arith.constant 0 : i32
    %c0_i32_0 = arith.constant 0 : i32
    return %c0_i32, %arg0 : i32, i32
  }
  func.func @transform_2(%arg0: i32) -> (i32, i32) {
    %c0_i32 = arith.constant 0 : i32
    %c0_i32_0 = arith.constant 0 : i32
    return %c0_i32, %arg0 : i32, i32
  }
}

</mosaic_0001>

<llo_original>
// kernel: tpu_custom_call.1
$region0: #{tpu_custom_call.1}
  #allocation0 [shape = 'u32[]', space=smem, size = 0x4, offset = 0x4, fixed_abs, tag = 'smem constant byte address 0x4 - core index']
  #allocation1 [shape = 'u32[72,128]{1,0:T(1,128)}', space=vmem, size = 0x9000, scoped, tag = 'internal scratch']
  %s0 = inlined_call_operand.vmem [shape: f32[32,8], index: 0, kind: input, shape index: {}]
  %s1 = inlined_call_operand.vmem [shape: f32[32,8], index: 1, kind: input, shape index: {}]
  %s2 = inlined_call_operand.hbm [shape: f32[1,128], index: 2, kind: output, shape index: {}]
  %s3 = sld [smem:[#allocation0]]
  $region18: #{tpu_custom_call.1} parent=0
    _
  %s5 = ssub.s32 1, %s3
  %s6 = scalar_select 0, %s5, %s3
  $region1: #{tpu_custom_call.1} parent=0
    #allocation2 [shape = 'u8[512]{0}', space=vmem, size = 0x400, scoped, tag = 'output window, operand 0, single buffered']
    #allocation3 [shape = 's32[1]{0}', space=sflag, size = 0x4, scoped, tag = 'scoped memory for tpu_custom_call.1']
    %7 = vsyncpa [#allocation3], 0
    // Predicated region
    $region2: #{tpu_custom_call.1} parent=1 // pred_check
      _
    $region3: #{tpu_custom_call.1} parent=1 // pred_check_branch
      %9 = sbr.rel (0) target = $region5
    $region4: #{tpu_custom_call.1} parent=1 // pred_region
      _
    $region5: #{tpu_custom_call.1} parent=1 // pred_fallthru
      _
    // Predicated region
    $region6: #{tpu_custom_call.1} parent=1 // pred_check
      _
    $region7: #{tpu_custom_call.1} parent=1 // pred_check_branch
      %11 = sbr.rel (0) target = $region9
    $region8: #{tpu_custom_call.1} parent=1 // pred_region
      _
    $region9: #{tpu_custom_call.1} parent=1 // pred_fallthru
      _
    %v12 = vld [vmem:[%s0] sm:$0xff]
    %v13 = vld [vmem:[%s1] sm:$0xff]
    %v14 = vmul.f32 %v12, %v13
    %v15 = vadd.f32 %v14, 0.0
    %v16 = vld [vmem:[%s0 + $0x8] sm:$0xff]
    %v17 = vld [vmem:[%s1 + $0x8] sm:$0xff]
    %v18 = vmul.f32 %v16, %v17
    %v19 = vadd.f32 %v15, %v18
    %v20 = vld [vmem:[%s0 + $0x10] sm:$0xff]
    %v21 = vld [vmem:[%s1 + $0x10] sm:$0xff]
    %v22 = vmul.f32 %v20, %v21
    %v23 = vadd.f32 %v19, %v22
    %v24 = vld [vmem:[%s0 + $0x18] sm:$0xff]
    %v25 = vld [vmem:[%s1 + $0x18] sm:$0xff]
    %v26 = vmul.f32 %v24, %v25
    %v27 = vadd.f32 %v23, %v26
    %v28 = vrot.slane %v27, 4
    %v29 = vadd.f32 %v27, %v28
    %v30 = vrot.slane %v29, 2
    %v31 = vadd.f32 %v29, %v30
    %v32 = vrot.slane %v31, 1
    %v33 = vadd.f32 %v31, %v32
    %v34 = vsub.f32 4.0, %v33
    %v35 = vmax.f32 %v34, 0.0
    %v36 = vsub.f32 4.0, %v35
    %v37 = vmax.f32 %v36, 0.0
    %v38 = vadd.f32 %v37, 1.0
    %39 = vst [vmem:[#allocation2] sm:$0x1] %v38
    // Predicated region
    $region10: #{tpu_custom_call.1} parent=1 // pred_check
      _
    $region11: #{tpu_custom_call.1} parent=1 // pred_check_branch
      %41 = sbr.rel (0) target = $region13
    $region12: #{tpu_custom_call.1} parent=1 // pred_region
      %43 = vsyncadd [#allocation3], 0
      %s45 = sshll.u32 [#allocation2], 4
      %s46 = int_to_ptr.vmem [resolvable:$true] %s45
      %s47 = sshll.u32 %s2, 4
      %s48 = int_to_ptr.hbm [resolvable:$true] %s47
      %50 = dma.vmem_to_hbm [thread:$0]  %s46, 16, %s48, [#allocation3]
    $region13: #{tpu_custom_call.1} parent=1 // pred_fallthru
      _
    // Predicated region
    $region14: #{tpu_custom_call.1} parent=1 // pred_check
      _
    $region15: #{tpu_custom_call.1} parent=1 // pred_check_branch
      %52 = sbr.rel (0) target = $region17
    $region16: #{tpu_custom_call.1} parent=1 // pred_region
      %54 = dma.done [#allocation3], 16
    $region17: #{tpu_custom_call.1} parent=1 // pred_fallthru
      _
    %55 = vsyncpa [#allocation3], 1

</llo_original>
